<compile_context>
chip_gen: v7x
topology: tpu7x:2x2x1
jax: 0.10.0
libtpu: 0.0.40
codegen_flags: <defaults>
</compile_context>

<pallas_src>
import functools

import jax
import jax.numpy as jnp
from jax.experimental import pallas as pl
from jax.experimental.pallas import tpu as pltpu

LANES = 128                    # TPU lane width (last dim of every block)
ACC_SUBLANES = 8               # f32 sublane tiling of the (8, 128) accumulator
BLOCK_BYTES_TARGET = 8 << 20   # combined (pred+true) bytes per grid-step block


def _sublane_multiple(dtype):
    # f32 -> 8, bf16/f16 -> 16, int8/fp8 -> 32 sublane packing.
    return max(8, 32 // jnp.dtype(dtype).itemsize)


def _detect_cores():
    """Best-effort (num_tensorcores, is_v7x); safe fallback = single core."""
    try:
        kind = (jax.devices()[0].device_kind or "").lower()
    except Exception:
        kind = ""
    if "v7" in kind:
        return 2, True
    return 1, False


def _loss_elems(x, y, inv_alpha):
    """Per-element BCEBlur loss in plain jnp (used for the tiny ragged tail)."""
    x = x.astype(jnp.float32)
    y = y.astype(jnp.float32)
    e = jnp.exp(-jnp.abs(x))
    loss = jnp.maximum(x, 0.0) - x * y + jnp.log1p(e)
    inv = 1.0 / (1.0 + e)
    p = jnp.where(x >= 0.0, inv, e * inv)
    dx = p - y
    return loss * (1.0 - jnp.exp((dx - 1.0) * inv_alpha))


def _bce_blur_kernel(pred_ref, true_ref, out_ref, *, inv_alpha, steps,
                     tile_rows, valid_rows, first_partial_block, mask_needed,
                     approx_sigmoid):
    c = pl.program_id(0)   # core-chunk axis (CORE_PARALLEL on v7x)
    i = pl.program_id(1)   # step within the chunk (reduction axis)

    @pl.when(i == 0)
    def _():
        out_ref[...] = jnp.zeros_like(out_ref)

    x = pred_ref[...].astype(jnp.float32)
    y = true_ref[...].astype(jnp.float32)

    # e = exp(-|x|) is reused for the stable softplus term AND for sigmoid(x).
    e = jnp.exp(-jnp.abs(x))
    # nn.BCEWithLogitsLoss(reduction='none'):
    #   loss = max(x, 0) - x*y + log(1 + exp(-|x|))   (numerically stable)
    loss = jnp.maximum(x, 0.0) - x * y + jnp.log1p(e)
    # sigmoid(x) = 1/(1+e) for x >= 0,  e/(1+e) for x < 0
    one_plus_e = 1.0 + e
    if approx_sigmoid:
        inv = pl.reciprocal(one_plus_e, approx=True)   # single EUP push (v7x)
    else:
        inv = 1.0 / one_plus_e
    p = jnp.where(x >= 0.0, inv, e * inv)
    dx = p - y
    # (dx - 1) / (alpha + 1e-4) with the divide constant-folded in Python.
    loss = loss * (1.0 - jnp.exp((dx - 1.0) * inv_alpha))

    def _accum(vals):
        # (tile_rows, 128) -> (tile_rows//8, 8, 128) -> (8, 128) partial sums;
        # the tiny cross-lane/sublane reduction is deferred to the wrapper.
        part = vals.reshape(-1, ACC_SUBLANES, LANES).sum(axis=0)
        out_ref[...] += part[None]

    if mask_needed:
        gb = c * steps + i   # global (unclamped) row-block index

        @pl.when(gb < first_partial_block)
        def _():
            _accum(loss)

        @pl.when(gb >= first_partial_block)
        def _():
            # Only blocks that can contain out-of-bounds rows pay for the
            # mask; a single row iota (no column iota needed — lanes are
            # always fully valid inside the main slab).
            r = jax.lax.broadcasted_iota(jnp.int32, loss.shape, 0)
            valid = (gb * tile_rows + r) < valid_rows
            _accum(jnp.where(valid, loss, 0.0))
    else:
        _accum(loss)


def bce_blur_with_logits_loss(pred, true, alpha=0.05, *,
                              approx_sigmoid=False,
                              block_rows=None, num_chunks=None):
    """Pallas equivalent of BCEBlurWithLogitsLoss(alpha).forward(pred, true)."""
    assert pred.shape == true.shape
    n = int(pred.size)
    assert n > 0
    inv_alpha = 1.0 / (float(alpha) + 1e-4)

    pred_flat = pred.reshape(-1)   # contiguous flatten: free
    true_flat = true.reshape(-1)

    sub_mult = max(_sublane_multiple(pred.dtype), _sublane_multiple(true.dtype))
    rows_main = (n // LANES) // sub_mult * sub_mult   # rows handled by kernel
    n_main = rows_main * LANES

    total = jnp.zeros((), jnp.float32)

    if rows_main > 0:
        itemsizes = (jnp.dtype(pred.dtype).itemsize +
                     jnp.dtype(true.dtype).itemsize)
        row_bytes = LANES * itemsizes

        if block_rows is None:
            block_rows = max(
                sub_mult,
                (BLOCK_BYTES_TARGET // row_bytes) // sub_mult * sub_mult)
        tile_rows = min(block_rows, rows_main)
        assert tile_rows % sub_mult == 0 and tile_rows % ACC_SUBLANES == 0

        nb = pl.cdiv(rows_main, tile_rows)   # row-blocks covering the slab

        detected_chunks, is_v7x = _detect_cores()
        if num_chunks is None:
            num_chunks = detected_chunks
        num_chunks = max(1, min(num_chunks, nb))
        steps = pl.cdiv(nb, num_chunks)

        if num_chunks > 1:
            lead_sem = (getattr(pltpu, "CORE_PARALLEL", "parallel")
                        if is_v7x else "parallel")
        else:
            lead_sem = "arbitrary"

        mask_needed = (num_chunks * steps * tile_rows) != rows_main
        first_partial_block = rows_main // tile_rows

        if n_main == n:
            pred2d = pred_flat.reshape(rows_main, LANES)
            true2d = true_flat.reshape(rows_main, LANES)
        else:
            pred2d = jax.lax.slice(pred_flat, (0,), (n_main,)).reshape(
                rows_main, LANES)
            true2d = jax.lax.slice(true_flat, (0,), (n_main,)).reshape(
                rows_main, LANES)

        kernel = functools.partial(
            _bce_blur_kernel, inv_alpha=inv_alpha, steps=steps,
            tile_rows=tile_rows, valid_rows=rows_main,
            first_partial_block=first_partial_block, mask_needed=mask_needed,
            approx_sigmoid=approx_sigmoid)

        # Clamp so duplicate trailing blocks (when num_chunks*steps > nb)
        # re-read a valid block; their contribution is masked to zero.
        in_map = lambda c, i: (jnp.minimum(c * steps + i, nb - 1), 0)

        in_block_bytes = tile_rows * row_bytes
        out_bytes = num_chunks * ACC_SUBLANES * LANES * 4
        vmem_limit = int(2 * in_block_bytes + out_bytes + (4 << 20))

        cost = pl.CostEstimate(
            flops=18 * n_main,
            transcendentals=3 * n_main,
            bytes_accessed=n_main * itemsizes + out_bytes)

        partials = pl.pallas_call(
            kernel,
            out_shape=jax.ShapeDtypeStruct((num_chunks, ACC_SUBLANES, LANES),
                                           jnp.float32),
            grid_spec=pltpu.PrefetchScalarGridSpec(
                num_scalar_prefetch=0,
                grid=(num_chunks, steps),
                in_specs=[
                    pl.BlockSpec((tile_rows, LANES), in_map),
                    pl.BlockSpec((tile_rows, LANES), in_map),
                ],
                out_specs=pl.BlockSpec((1, ACC_SUBLANES, LANES),
                                       lambda c, i: (c, 0, 0)),
            ),
            compiler_params=pltpu.CompilerParams(
                dimension_semantics=(lead_sem, "arbitrary"),
                vmem_limit_bytes=vmem_limit),
            cost_estimate=cost,
        )(pred2d, true2d)

        total = total + jnp.sum(partials)

    if n_main != n:
        # Tiny sub-block tail handled in plain jnp (no pad/copy of the tensor).
        tail_p = jax.lax.slice(pred_flat, (n_main,), (n,))
        tail_t = jax.lax.slice(true_flat, (n_main,), (n,))
        total = total + jnp.sum(_loss_elems(tail_p, tail_t, inv_alpha))

    return total / n


def _reference(pred, true, alpha=0.05):
    x = pred.astype(jnp.float32)
    y = true.astype(jnp.float32)
    loss = jnp.maximum(x, 0.0) - x * y + jnp.log1p(jnp.exp(-jnp.abs(x)))
    p = jax.nn.sigmoid(x)
    dx = p - y
    loss = loss * (1.0 - jnp.exp((dx - 1.0) / (alpha + 1e-4)))
    return jnp.mean(loss)


if __name__ == "__main__":
    key = jax.random.PRNGKey(0)
    keys = jax.random.split(key, 6)

    # 1) Aligned NCHW-like logits/targets (n = 2048 -> no tail, no mask).
    shape = (2, 4, 16, 16)
    pred = jax.random.normal(keys[0], shape, dtype=jnp.float32)
    true = jax.random.uniform(keys[1], shape, dtype=jnp.float32)
    out = jax.block_until_ready(bce_blur_with_logits_loss(pred, true, alpha=0.05))
    ref = _reference(pred, true, alpha=0.05)
    assert jnp.allclose(out, ref, atol=1e-5, rtol=1e-5), (out, ref)

    # 2) Ragged shape (n = 1155): exercises the no-pad jnp tail path.
    shape2 = (3, 5, 7, 11)
    pred2 = jax.random.normal(keys[2], shape2, dtype=jnp.float32)
    true2 = jax.random.uniform(keys[3], shape2, dtype=jnp.float32)
    out2 = jax.block_until_ready(bce_blur_with_logits_loss(pred2, true2, alpha=0.05))
    ref2 = _reference(pred2, true2, alpha=0.05)
    assert jnp.allclose(out2, ref2, atol=1e-5, rtol=1e-5), (out2, ref2)

    # 3) Small blocks + 2 chunks: exercises the in-kernel masked boundary block
    #    and the chunked accumulation (v7x-style split) on any chip.
    shape3 = (3, 8, 128)   # 24 rows, tile_rows=16 -> partial boundary block
    pred3 = jax.random.normal(keys[4], shape3, dtype=jnp.float32)
    true3 = jax.random.uniform(keys[5], shape3, dtype=jnp.float32)
    out3 = jax.block_until_ready(
        bce_blur_with_logits_loss(pred3, true3, alpha=0.05,
                                  block_rows=16, num_chunks=2))
    ref3 = _reference(pred3, true3, alpha=0.05)
    assert jnp.allclose(out3, ref3, atol=1e-5, rtol=1e-5), (out3, ref3)

    # 4) bf16 inputs: native-dtype DMA with 16-row sublane packing.
    pred4 = pred.astype(jnp.bfloat16)
    true4 = true.astype(jnp.bfloat16)
    out4 = jax.block_until_ready(bce_blur_with_logits_loss(pred4, true4, alpha=0.05))
    ref4 = _reference(pred4, true4, alpha=0.05)
    assert jnp.allclose(out4, ref4, atol=3e-5, rtol=1e-4), (out4, ref4)

    # 5) Approx-reciprocal sigmoid (EUP saving, recommended on v7x):
    #    validated at a looser tolerance.
    out5 = jax.block_until_ready(
        bce_blur_with_logits_loss(pred, true, alpha=0.05, approx_sigmoid=True))
    assert jnp.allclose(out5, ref, atol=2e-3, rtol=2e-2), (out5, ref)

    print("KERNEL_OK")
</pallas_src>

<mosaic_0001>
module attributes {stable_mosaic.version = 11 : i64} {
  func.func @_bce_blur_kernel(%arg0: i32, %arg1: i32, %arg2: memref<16x128xf32, #tpu.memory_space<vmem>>, %arg3: memref<16x128xf32, #tpu.memory_space<vmem>>, %arg4: memref<1x8x128xf32, #tpu.memory_space<vmem>>) attributes {dimension_semantics = [#tpu.dimension_semantics<arbitrary>, #tpu.dimension_semantics<arbitrary>], iteration_bounds = array<i64: 1, 1>, scalar_prefetch = 0 : i64, scratch_operands = 0 : i64, tpu.core_type = #tpu.core_type<tc>, window_params = [{transform_indices = @transform_0, window_bounds = array<i64: 16, 128>}, {transform_indices = @transform_1, window_bounds = array<i64: 16, 128>}, {transform_indices = @transform_2, window_bounds = array<i64: 1, 8, 128>}]} {
    %c0_i32 = arith.constant 0 : i32
    %0 = arith.cmpi eq, %arg1, %c0_i32 : i32
    %1 = arith.extui %0 : i1 to i32
    %c0_i32_0 = arith.constant 0 : i32
    %2 = arith.cmpi ne, %1, %c0_i32_0 : i32
    scf.if %2 {
      %cst_18 = arith.constant 0.000000e+00 : f32
      %38 = vector.broadcast %cst_18 : f32 to vector<1x8x128xf32>
      %c0_19 = arith.constant 0 : index
      %c0_20 = arith.constant 0 : index
      %c0_21 = arith.constant 0 : index
      %39 = vector.load %arg4[%c0_19, %c0_20, %c0_21] : memref<1x8x128xf32, #tpu.memory_space<vmem>>, vector<1x8x128xf32>
      tpu.vector_store %arg4[%c0_19, %c0_20, %c0_21], %38 {strides = array<i32>} : memref<1x8x128xf32, #tpu.memory_space<vmem>>, vector<1x8x128xf32>,
    } else {
    }
    %c0 = arith.constant 0 : index
    %c0_1 = arith.constant 0 : index
    %3 = vector.load %arg2[%c0, %c0_1] : memref<16x128xf32, #tpu.memory_space<vmem>>, vector<16x128xf32>
    %c0_2 = arith.constant 0 : index
    %c0_3 = arith.constant 0 : index
    %4 = vector.load %arg3[%c0_2, %c0_3] : memref<16x128xf32, #tpu.memory_space<vmem>>, vector<16x128xf32>
    %5 = math.absf %3 : vector<16x128xf32>
    %cst = arith.constant 0.000000e+00 : f32
    %6 = vector.broadcast %cst : f32 to vector<16x128xf32>
    %7 = arith.subf %6, %5 : vector<16x128xf32>
    %8 = math.exp %7 : vector<16x128xf32>
    %cst_4 = arith.constant 0.000000e+00 : f32
    %9 = vector.broadcast %cst_4 : f32 to vector<16x128xf32>
    %10 = arith.maximumf %3, %9 : vector<16x128xf32>
    %11 = arith.mulf %3, %4 : vector<16x128xf32>
    %12 = arith.subf %10, %11 : vector<16x128xf32>
    %13 = math.log1p %8 : vector<16x128xf32>
    %14 = arith.addf %12, %13 : vector<16x128xf32>
    %cst_5 = arith.constant 1.000000e+00 : f32
    %15 = vector.broadcast %cst_5 : f32 to vector<16x128xf32>
    %16 = arith.addf %15, %8 : vector<16x128xf32>
    %cst_6 = arith.constant 1.000000e+00 : f32
    %17 = vector.broadcast %cst_6 : f32 to vector<16x128xf32>
    %18 = arith.divf %17, %16 : vector<16x128xf32>
    %cst_7 = arith.constant 0.000000e+00 : f32
    %19 = vector.broadcast %cst_7 : f32 to vector<16x128xf32>
    %20 = arith.cmpf oge, %3, %19 : vector<16x128xf32>
    %21 = arith.mulf %8, %18 : vector<16x128xf32>
    %22 = arith.select %20, %18, %21 : vector<16x128xi1>, vector<16x128xf32>
    %23 = arith.subf %22, %4 : vector<16x128xf32>
    %cst_8 = arith.constant 1.000000e+00 : f32
    %24 = vector.broadcast %cst_8 : f32 to vector<16x128xf32>
    %25 = arith.subf %23, %24 : vector<16x128xf32>
    %cst_9 = arith.constant 19.9600792 : f32
    %26 = vector.broadcast %cst_9 : f32 to vector<16x128xf32>
    %27 = arith.mulf %25, %26 : vector<16x128xf32>
    %28 = math.exp %27 : vector<16x128xf32>
    %cst_10 = arith.constant 1.000000e+00 : f32
    %29 = vector.broadcast %cst_10 : f32 to vector<16x128xf32>
    %30 = arith.subf %29, %28 : vector<16x128xf32>
    %31 = arith.mulf %14, %30 : vector<16x128xf32>
    %32 = vector.shape_cast %31 : vector<16x128xf32> to vector<2x8x128xf32>
    %cst_11 = arith.constant dense<0.000000e+00> : vector<8x128xf32>
    %33 = vector.multi_reduction <add>, %32, %cst_11 [0] : vector<2x8x128xf32> to vector<8x128xf32>
    %c0_12 = arith.constant 0 : index
    %c0_13 = arith.constant 0 : index
    %c0_14 = arith.constant 0 : index
    %34 = vector.load %arg4[%c0_12, %c0_13, %c0_14] : memref<1x8x128xf32, #tpu.memory_space<vmem>>, vector<1x8x128xf32>
    %35 = vector.shape_cast %33 : vector<8x128xf32> to vector<1x8x128xf32>
    %36 = arith.addf %34, %35 : vector<1x8x128xf32>
    %c0_15 = arith.constant 0 : index
    %c0_16 = arith.constant 0 : index
    %c0_17 = arith.constant 0 : index
    %37 = vector.load %arg4[%c0_15, %c0_16, %c0_17] : memref<1x8x128xf32, #tpu.memory_space<vmem>>, vector<1x8x128xf32>
    tpu.vector_store %arg4[%c0_15, %c0_16, %c0_17], %36 {strides = array<i32>} : memref<1x8x128xf32, #tpu.memory_space<vmem>>, vector<1x8x128xf32>,
    return
  }
  func.func @transform_0(%arg0: i32, %arg1: i32) -> (i32, i32) {
    %c1_i32 = arith.constant 1 : i32
    %0 = arith.muli %arg0, %c1_i32 : i32
    %1 = arith.addi %0, %arg1 : i32
    %c0_i32 = arith.constant 0 : i32
    %2 = arith.minsi %1, %c0_i32 : i32
    %c0_i32_0 = arith.constant 0 : i32
    %c0_i32_1 = arith.constant 0 : i32
    return %2, %c0_i32_0 : i32, i32
  }
  func.func @transform_1(%arg0: i32, %arg1: i32) -> (i32, i32) {
    %c1_i32 = arith.constant 1 : i32
    %0 = arith.muli %arg0, %c1_i32 : i32
    %1 = arith.addi %0, %arg1 : i32
    %c0_i32 = arith.constant 0 : i32
    %2 = arith.minsi %1, %c0_i32 : i32
    %c0_i32_0 = arith.constant 0 : i32
    %c0_i32_1 = arith.constant 0 : i32
    return %2, %c0_i32_0 : i32, i32
  }
  func.func @transform_2(%arg0: i32, %arg1: i32) -> (i32, i32, i32) {
    %c0_i32 = arith.constant 0 : i32
    %c0_i32_0 = arith.constant 0 : i32
    %c0_i32_1 = arith.constant 0 : i32
    return %arg0, %c0_i32, %c0_i32_0 : i32, i32, i32
  }
}

</mosaic_0001>

<llo_original>
// kernel: tpu_custom_call.1
$region0: #{tpu_custom_call.1}
  #allocation0 [shape = 'u32[]', space=smem, size = 0x4, offset = 0x4, fixed_abs, tag = 'smem constant byte address 0x4 - core index']
  #allocation1 [shape = 'u32[144,128]{1,0:T(1,128)}', space=vmem, size = 0x12000, scoped, tag = 'internal scratch']
  %s0 = inlined_call_operand.hbm [shape: f32[16,128], index: 0, kind: input, shape index: {}]
  %s1 = inlined_call_operand.hbm [shape: f32[16,128], index: 1, kind: input, shape index: {}]
  %s2 = inlined_call_operand.hbm [shape: f32[1,8,128], index: 2, kind: output, shape index: {}]
  %s3 = sld [smem:[#allocation0]]
  $region30: #{tpu_custom_call.1} parent=0
    _
  %s5 = ssub.s32 1, %s3
  %s6 = scalar_select 0, %s5, %s3
  $region1: #{tpu_custom_call.1} parent=0
    #allocation2 [shape = 'u8[8192]{0}', space=vmem, size = 0x2000, scoped, tag = 'input window, operand 0, single buffered']
    #allocation3 [shape = 's32[1]{0}', space=sflag, size = 0x4, scoped, tag = 'scoped memory for tpu_custom_call.1']
    #allocation4 [shape = 's32[1]{0}', space=sflag, size = 0x4, scoped, tag = 'scoped memory for tpu_custom_call.1']
    #allocation5 [shape = 'u8[8192]{0}', space=vmem, size = 0x2000, scoped, tag = 'input window, operand 1, single buffered']
    #allocation6 [shape = 's32[1]{0}', space=sflag, size = 0x4, scoped, tag = 'scoped memory for tpu_custom_call.1']
    #allocation7 [shape = 'u8[4096]{0}', space=vmem, size = 0x1000, scoped, tag = 'output window, operand 0, single buffered']
    %7 = vsyncpa [#allocation3], 0
    %8 = vsyncpa [#allocation6], 0
    %9 = vsyncpa [#allocation4], 0
    // Predicated region
    $region2: #{tpu_custom_call.1} parent=1 // pred_check
      _
    $region3: #{tpu_custom_call.1} parent=1 // pred_check_branch
      %11 = sbr.rel (0) target = $region5
    $region4: #{tpu_custom_call.1} parent=1 // pred_region
      %s12 = sadd.s32 0, 0
      %p13 = scmp.lt.s32.totalorder %s12, 0
      %s14 = scalar_select %p13, %s12, 0
      %s15 = smul.u32 2, %s14
      %s17 = ssub.s32 256, 256
      %18 = vsyncadd [#allocation3], %s17
      %s19 = smul.addr %s15, 128
      %s20 = scalar_lea.hbm %s0, %s19
      %s21 = sshll.u32 [#allocation2], 4
      %s22 = int_to_ptr.vmem [resolvable:$true] %s21
      %27 = dma.hbm_to_vmem [thread:$0]  %s20, 256, %s22, [#allocation3], 128, 128, 8
    $region5: #{tpu_custom_call.1} parent=1 // pred_fallthru
      _
    // Predicated region
    $region6: #{tpu_custom_call.1} parent=1 // pred_check
      _
    $region7: #{tpu_custom_call.1} parent=1 // pred_check_branch
      %29 = sbr.rel (0) target = $region9
    $region8: #{tpu_custom_call.1} parent=1 // pred_region
      %s30 = sadd.s32 0, 0
      %p31 = scmp.lt.s32.totalorder %s30, 0
      %s32 = scalar_select %p31, %s30, 0
      %s33 = smul.u32 2, %s32
      %s35 = ssub.s32 256, 256
      %36 = vsyncadd [#allocation6], %s35
      %s37 = smul.addr %s33, 128
      %s38 = scalar_lea.hbm %s1, %s37
      %s39 = sshll.u32 [#allocation5], 4
      %s40 = int_to_ptr.vmem [resolvable:$true] %s39
      %45 = dma.hbm_to_vmem [thread:$0]  %s38, 256, %s40, [#allocation6], 128, 128, 8
    $region9: #{tpu_custom_call.1} parent=1 // pred_fallthru
      _
    // Predicated region
    $region10: #{tpu_custom_call.1} parent=1 // pred_check
      _
    $region11: #{tpu_custom_call.1} parent=1 // pred_check_branch
      %47 = sbr.rel (0) target = $region13
    $region12: #{tpu_custom_call.1} parent=1 // pred_region
      %48 = dma.done [#allocation3], 256
    $region13: #{tpu_custom_call.1} parent=1 // pred_fallthru
      _
    // Predicated region
    $region14: #{tpu_custom_call.1} parent=1 // pred_check
      _
    $region15: #{tpu_custom_call.1} parent=1 // pred_check_branch
      %50 = sbr.rel (0) target = $region17
    $region16: #{tpu_custom_call.1} parent=1 // pred_region
      %51 = dma.done [#allocation6], 256
    $region17: #{tpu_custom_call.1} parent=1 // pred_fallthru
      _
    %s52 = sadd.s32 0, 0
    %p53 = scmp.lt.s32.totalorder %s52, 0
    %s54 = scalar_select %p53, %s52, 0
    %s55 = smul.u32 2, %s54
    %s56 = sadd.s32 0, 0
    %p57 = scmp.lt.s32.totalorder %s56, 0
    %s58 = scalar_select %p57, %s56, 0
    %s59 = smul.u32 2, %s58
    %p60 = scmp.eq.s32.totalorder 0, 0
    // Predicated region
    $region18: #{tpu_custom_call.1} parent=1 // pred_check
      %p61 = pneg %p60
    $region19: #{tpu_custom_call.1} parent=1 // pred_check_branch
      %63 = sbr.rel (%p61) target = $region21
    $region20: #{tpu_custom_call.1} parent=1 // pred_region
      %64 = vst [vmem:[#allocation7] sm:$0xff] 0.0
    $region21: #{tpu_custom_call.1} parent=1 // pred_fallthru
      _
    %v65 = vld [vmem:[#allocation2] sm:$0xff]
    %v66 = vld [vmem:[#allocation2 + $0x8] sm:$0xff]
    %v67 = vld [vmem:[#allocation5] sm:$0xff]
    %v68 = vld [vmem:[#allocation5 + $0x8] sm:$0xff]
    %v69 = vand.u32 2147483647, %v65
    %v70 = vand.u32 2147483647, %v66
    %v71 = vsub.f32 0.0, %v69
    %v72 = vsub.f32 0.0, %v70
    %v73 = vmul.f32 %v71, 1.442695
    %v74 = vpow.pop %v73
    %v75 = vmul.f32 %v72, 1.442695
    %v76 = vpow.pop %v75
    %v77 = vmax.f32 %v65, 0.0
    %v78 = vmax.f32 %v66, 0.0
    %v79 = vmul.f32 %v65, %v67
    %v80 = vmul.f32 %v66, %v68
    %v81 = vsub.f32 %v77, %v79
    %v82 = vsub.f32 %v78, %v80
    %v83 = vadd.f32 %v74, 1.0
    %v84 = vlog2.pop %v83
    %v85 = vmul.f32 %v84, 0.6931472
    %v86 = vmul.f32 -0.5, %v74
    %v87 = vadd.f32 %v86, 1.0
    %v88 = vmul.f32 %v87, %v74
    %v89 = vand.u32 2147483647, %v74
    %vm90 = vcmp.lt.f32.partialorder %v89, 0.0004427343
    %v91 = vsel %vm90, %v88, %v85
    %v92 = vadd.f32 %v76, 1.0
    %v93 = vlog2.pop %v92
    %v94 = vmul.f32 %v93, 0.6931472
    %v95 = vmul.f32 -0.5, %v76
    %v96 = vadd.f32 %v95, 1.0
    %v97 = vmul.f32 %v96, %v76
    %v98 = vand.u32 2147483647, %v76
    %vm99 = vcmp.lt.f32.partialorder %v98, 0.0004427343
    %v100 = vsel %vm99, %v97, %v94
    %v101 = vadd.f32 %v81, %v91
    %v102 = vadd.f32 %v82, %v100
    %v103 = vadd.f32 %v74, 1.0
    %v104 = vadd.f32 %v76, 1.0
    %v105 = vrcp.pop %v103
    %v106 = vmul.f32 1.0, %v105
    %v107 = vrcp.pop %v104
    %v108 = vmul.f32 1.0, %v107
    %vm109 = vcmp.ge.f32.partialorder %v65, 0.0
    %vm110 = vcmp.ge.f32.partialorder %v66, 0.0
    %v111 = vmul.f32 %v74, %v106
    %v112 = vmul.f32 %v76, %v108
    %v113 = vsel %vm109, %v106, %v111
    %v114 = vsel %vm110, %v108, %v112
    %v115 = vsub.f32 %v113, %v67
    %v116 = vsub.f32 %v114, %v68
    %v117 = vsub.f32 %v115, 1.0
    %v118 = vsub.f32 %v116, 1.0
    %v119 = vmul.f32 %v117, 19.96008
    %v120 = vmul.f32 %v118, 19.96008
    %v121 = vmul.f32 %v119, 1.442695
    %v122 = vpow.pop %v121
    %v123 = vmul.f32 %v120, 1.442695
    %v124 = vpow.pop %v123
    %v125 = vsub.f32 1.0, %v122
    %v126 = vsub.f32 1.0, %v124
    %v127 = vmul.f32 %v101, %v125
    %v128 = vmul.f32 %v102, %v126
    %v129 = vadd.f32 %v127, %v128
    %v130 = vld [vmem:[#allocation7] sm:$0xff]
    %v131 = vadd.f32 %v130, %v129
    %132 = vst [vmem:[#allocation7] sm:$0xff] %v131
    // Predicated region
    $region22: #{tpu_custom_call.1} parent=1 // pred_check
      _
    $region23: #{tpu_custom_call.1} parent=1 // pred_check_branch
      %134 = sbr.rel (0) target = $region25
    $region24: #{tpu_custom_call.1} parent=1 // pred_region
      %s136 = ssub.s32 128, 128
      %137 = vsyncadd [#allocation4], %s136
      %s139 = sshll.u32 [#allocation7], 4
      %s140 = int_to_ptr.vmem [resolvable:$true] %s139
      %142 = dma.vmem_to_hbm [thread:$0]  %s140, 128, %s2, [#allocation4]
    $region25: #{tpu_custom_call.1} parent=1 // pred_fallthru
      _
    // Predicated region
    $region26: #{tpu_custom_call.1} parent=1 // pred_check
      _
    $region27: #{tpu_custom_call.1} parent=1 // pred_check_branch
      %144 = sbr.rel (0) target = $region29
    $region28: #{tpu_custom_call.1} parent=1 // pred_region
      %145 = dma.done [#allocation4], 128
    $region29: #{tpu_custom_call.1} parent=1 // pred_fallthru
      _
    %146 = vsyncpa [#allocation3], 1
    %147 = vsyncpa [#allocation6], 1
    %148 = vsyncpa [#allocation4], 1

</llo_original>
